<compile_context>
chip_gen: v7x
topology: tpu7x:2x2x1
jax: 0.10.0
libtpu: 0.0.40
codegen_flags: <defaults>
</compile_context>

<pallas_src>
import jax
import jax.numpy as jnp
from jax.experimental import pallas as pl
from jax.experimental.pallas import tpu as pltpu


def _round_up(x: int, m: int) -> int:
    return ((x + m - 1) // m) * m


def _pick_tile(dim: int, target: int, align: int) -> int:
    """Largest power-of-two multiple of `align` that divides `dim` (already
    `align`-aligned) and is <= target.  Guarantees zero tile padding waste."""
    tile = align
    c = align
    limit = min(target, dim)
    while c <= limit:
        if dim % c == 0:
            tile = c
        c *= 2
    return tile


def _vmem_capacity_bytes() -> int:
    try:
        info = pltpu.get_tpu_info()
        cap = getattr(info, "vmem_capacity_bytes", None)
        if cap:
            return int(cap)
    except Exception:
        pass
    return 64 * 1024 * 1024  # conservative default (v7x per-TC physical VMEM)


# ---------------------------------------------------------------------------
# Kernels
# ---------------------------------------------------------------------------

def _linear_act_kernel_single_k(x_ref, w_ref, b_ref, o_ref):
    # Whole contraction in one MXU call; fused bias + ReLU epilogue, f32 math.
    acc = jnp.dot(x_ref[...], w_ref[...], preferred_element_type=jnp.float32)
    o_ref[...] = jnp.maximum(acc + b_ref[...], 0.0).astype(o_ref.dtype)


def _linear_act_kernel_multi_k(x_ref, w_ref, b_ref, o_ref, acc_ref):
    k = pl.program_id(2)

    @pl.when(k == 0)
    def _init():
        acc_ref[...] = jnp.zeros_like(acc_ref)

    acc_ref[...] += jnp.dot(
        x_ref[...], w_ref[...], preferred_element_type=jnp.float32
    )

    @pl.when(k == pl.num_programs(2) - 1)
    def _epilogue():
        y = acc_ref[...] + b_ref[...]
        o_ref[...] = jnp.maximum(y, 0.0).astype(o_ref.dtype)


# ---------------------------------------------------------------------------
# Wrapper
# ---------------------------------------------------------------------------

def prepare_linear_params(w_t, b, compute_dtype=jnp.bfloat16):
    """One-time pad (to 128-aligned) + cast of parameters so the per-call path
    does not stream the weight matrix through HBM for padding every call."""
    K, N = w_t.shape
    Kp, Np = _round_up(K, 128), _round_up(N, 128)
    wp = jnp.pad(w_t, ((0, Kp - K), (0, Np - N))).astype(compute_dtype)
    bp = jnp.pad(b.reshape(1, -1), ((0, 0), (0, Np - N))).astype(jnp.float32)
    return wp, bp


def linear_with_activation(
    x,
    w_t,
    b,
    *,
    out_dim=None,
    tm_target=512,
    tn_target=512,
    tk_target=1024,
    tk_max=None,
    compute_dtype=jnp.bfloat16,
):
    """x: [B, D_in]; w_t: [D_in, D_out] (pre-transposed nn.Linear weight, may be
    pre-padded/cast via prepare_linear_params); b: [D_out] or [1, N].
    Returns ReLU(x @ w_t + b) as [B, out_dim] in x.dtype."""
    B, D_in = x.shape
    K_w, N_w = w_t.shape
    D_out = int(out_dim) if out_dim is not None else N_w
    out_dtype = x.dtype

    # Aligned problem dims (only alignment padding; tiles divide these exactly).
    M = _round_up(B, 8)
    K = _round_up(max(D_in, K_w), 128)
    N = _round_up(N_w, 128)

    in_bytes = jnp.dtype(compute_dtype).itemsize
    out_bytes = jnp.dtype(out_dtype).itemsize

    cap = _vmem_capacity_bytes()
    budget = max(16 << 20, cap // 2 - (4 << 20))  # tile working-set budget

    def est(tm_, tn_, tk_, multi_k_):
        # Double-buffered x, w, bias inputs + double-buffered output tile.
        e = 2 * (tm_ * tk_ * in_bytes + tk_ * tn_ * in_bytes + tn_ * 4)
        e += 2 * tm_ * tn_ * out_bytes
        if multi_k_:
            e += tm_ * tn_ * 4  # f32 accumulator scratch
        return e

    tm = _pick_tile(M, tm_target, 8)
    tn = _pick_tile(N, tn_target, 128)

    # Guarantee >=2 parallel blocks for v7x's two TensorCores when possible.
    if (M // tm) * (N // tn) < 2 and N >= 2 * 128:
        tn = _pick_tile(N, max(128, tn // 2), 128)

    # Prefer collapsing the K grid axis (single dot, no accumulator).
    tk = K
    multi_k = False
    if tk_max is not None and K > tk_max:
        tk = _pick_tile(K, max(128, int(tk_max)), 128)
        multi_k = tk < K
    elif est(tm, tn, tk, multi_k) > budget:
        tk = _pick_tile(K, tk_target, 128)
        multi_k = tk < K

    # Shrink tiles (largest first) until the working set fits the budget.
    while est(tm, tn, tk, multi_k) > budget:
        new_tk = _pick_tile(K, max(128, tk // 2), 128) if tk > 128 else tk
        new_tn = _pick_tile(N, max(128, tn // 2), 128) if tn > 128 else tn
        new_tm = _pick_tile(M, max(8, tm // 2), 8) if tm > 8 else tm
        options = []
        if new_tk < tk:
            options.append((tk, "tk", new_tk))
        if new_tn < tn:
            options.append((tn, "tn", new_tn))
        if new_tm < tm:
            options.append((tm, "tm", new_tm))
        if not options:
            break
        _, which, val = max(options)
        if which == "tk":
            tk = val
            multi_k = tk < K
        elif which == "tn":
            tn = val
        else:
            tm = val

    # Pad (only when needed) and cast to the MXU compute dtype.
    def _pad2(a, rows, cols):
        pr, pc = rows - a.shape[0], cols - a.shape[1]
        if pr or pc:
            a = jnp.pad(a, ((0, pr), (0, pc)))
        return a

    xp = _pad2(x, M, K)
    if xp.dtype != compute_dtype:
        xp = xp.astype(compute_dtype)
    wp = _pad2(w_t, K, N)
    if wp.dtype != compute_dtype:
        wp = wp.astype(compute_dtype)
    b2 = b if b.ndim == 2 else b.reshape(1, -1)
    bp = _pad2(b2, 1, N)
    if bp.dtype != jnp.float32:
        bp = bp.astype(jnp.float32)

    vmem_limit = int(min(cap * 3 // 4, max(32 << 20, 2 * est(tm, tn, tk, multi_k))))

    if multi_k:
        grid = (M // tm, N // tn, K // tk)
        in_specs = [
            pl.BlockSpec((tm, tk), lambda i, j, k: (i, k)),  # x tile
            pl.BlockSpec((tk, tn), lambda i, j, k: (k, j)),  # weight tile
            pl.BlockSpec((1, tn), lambda i, j, k: (0, j)),   # bias tile (N only)
        ]
        out_specs = pl.BlockSpec((tm, tn), lambda i, j, k: (i, j))
        scratch = [pltpu.VMEM((tm, tn), jnp.float32)]
        kernel = _linear_act_kernel_multi_k
        dims = ("parallel", "parallel", "arbitrary")
    else:
        grid = (M // tm, N // tn)
        in_specs = [
            pl.BlockSpec((tm, K), lambda i, j: (i, 0)),
            pl.BlockSpec((K, tn), lambda i, j: (0, j)),
            pl.BlockSpec((1, tn), lambda i, j: (0, j)),
        ]
        out_specs = pl.BlockSpec((tm, tn), lambda i, j: (i, j))
        scratch = []
        kernel = _linear_act_kernel_single_k
        dims = ("parallel", "parallel")

    out_padded = pl.pallas_call(
        kernel,
        out_shape=jax.ShapeDtypeStruct((M, N), out_dtype),
        grid_spec=pltpu.PrefetchScalarGridSpec(
            num_scalar_prefetch=0,
            grid=grid,
            in_specs=in_specs,
            out_specs=out_specs,
            scratch_shapes=scratch,
        ),
        compiler_params=pltpu.CompilerParams(
            dimension_semantics=dims,
            vmem_limit_bytes=vmem_limit,
        ),
    )(xp, wp, bp)

    return out_padded[:B, :D_out]


def init_params(key, input_dim, output_dim):
    # Deterministic init mirroring nn.Linear default: U(-1/sqrt(in), 1/sqrt(in))
    kw, kb = jax.random.split(key)
    bound = 1.0 / jnp.sqrt(jnp.float32(input_dim))
    # PyTorch weight is [out, in]; store transposed [in, out] for the kernel.
    w = jax.random.uniform(kw, (output_dim, input_dim), jnp.float32, -bound, bound)
    b = jax.random.uniform(kb, (output_dim,), jnp.float32, -bound, bound)
    return w.T, b


if __name__ == "__main__":
    key = jax.random.PRNGKey(0)
    k_x, k_p, k_x2, k_p2, k_x3, k_p3 = jax.random.split(key, 6)

    # Toy shape matching the module usage (small MLP layer).
    batch, input_dim, output_dim = 8, 32, 64
    x = jax.random.normal(k_x, (batch, input_dim), jnp.float32)
    w_t, b = init_params(k_p, input_dim, output_dim)

    # Hoisted, one-time weight/bias padding + bf16 cast.
    wp, bp = prepare_linear_params(w_t, b)
    out = linear_with_activation(x, wp, bp, out_dim=output_dim)
    jax.block_until_ready(out)
    ref = jnp.maximum(x @ w_t + b.reshape(1, -1), 0.0)
    assert out.shape == (batch, output_dim)
    assert jnp.allclose(out, ref, atol=2e-2, rtol=2e-2)

    # Unaligned dims, raw (unprepared) params: exercises in-call padding, the
    # N-split-for-two-cores path, and the collapsed-K single-dot kernel.
    batch2, in2, out2 = 16, 160, 192
    x2 = jax.random.normal(k_x2, (batch2, in2), jnp.float32)
    w2_t, b2 = init_params(k_p2, in2, out2)
    y2 = linear_with_activation(x2, w2_t, b2)
    jax.block_until_ready(y2)
    ref2 = jnp.maximum(x2 @ w2_t + b2.reshape(1, -1), 0.0)
    assert y2.shape == (batch2, out2)
    assert jnp.allclose(y2, ref2, atol=2e-2, rtol=2e-2)

    # Force the multi-K accumulator path (tk_max) to exercise the K grid,
    # accumulator scratch and the pl.when init/epilogue.
    batch3, in3, out3 = 32, 256, 128
    x3 = jax.random.normal(k_x3, (batch3, in3), jnp.float32)
    w3_t, b3 = init_params(k_p3, in3, out3)
    y3 = linear_with_activation(x3, w3_t, b3, tk_max=128)
    jax.block_until_ready(y3)
    ref3 = jnp.maximum(x3 @ w3_t + b3.reshape(1, -1), 0.0)
    assert y3.shape == (batch3, out3)
    assert jnp.allclose(y3, ref3, atol=5e-2, rtol=5e-2)

    print("KERNEL_OK")
</pallas_src>

<mosaic_0001>
module attributes {stable_mosaic.version = 11 : i64} {
  func.func @_linear_act_kernel_single_k(%arg0: i32, %arg1: i32, %arg2: memref<8x128xbf16, #tpu.memory_space<vmem>>, %arg3: memref<128x128xbf16, #tpu.memory_space<vmem>>, %arg4: memref<1x128xf32, #tpu.memory_space<vmem>>, %arg5: memref<8x128xf32, #tpu.memory_space<vmem>>) attributes {dimension_semantics = [#tpu.dimension_semantics<parallel>, #tpu.dimension_semantics<parallel>], iteration_bounds = array<i64: 1, 1>, scalar_prefetch = 0 : i64, scratch_operands = 0 : i64, tpu.core_type = #tpu.core_type<tc>, window_params = [{transform_indices = @transform_0, window_bounds = array<i64: 8, 128>}, {transform_indices = @transform_1, window_bounds = array<i64: 128, 128>}, {transform_indices = @transform_2, window_bounds = array<i64: 1, 128>}, {transform_indices = @transform_3, window_bounds = array<i64: 8, 128>}]} {
    %c0 = arith.constant 0 : index
    %c0_0 = arith.constant 0 : index
    %0 = vector.load %arg2[%c0, %c0_0] : memref<8x128xbf16, #tpu.memory_space<vmem>>, vector<8x128xbf16>
    %c0_1 = arith.constant 0 : index
    %c0_2 = arith.constant 0 : index
    %1 = vector.load %arg3[%c0_1, %c0_2] : memref<128x128xbf16, #tpu.memory_space<vmem>>, vector<128x128xbf16>
    %cst = arith.constant dense<0.000000e+00> : vector<8x128xf32>
    %2 = tpu.matmul %0, %1, %cst {dimension_numbers = #tpu.dot_dimension_numbers<[1], [0], [0], [1], [0, 0, 1, 1], [], []>} : vector<8x128xbf16>, vector<128x128xbf16>, vector<8x128xf32> -> vector<8x128xf32>
    %c0_3 = arith.constant 0 : index
    %c0_4 = arith.constant 0 : index
    %3 = vector.load %arg4[%c0_3, %c0_4] : memref<1x128xf32, #tpu.memory_space<vmem>>, vector<1x128xf32>
    %4 = vector.broadcast %3 : vector<1x128xf32> to vector<8x128xf32>
    %5 = arith.addf %2, %4 : vector<8x128xf32>
    %cst_5 = arith.constant 0.000000e+00 : f32
    %6 = vector.broadcast %cst_5 : f32 to vector<8x128xf32>
    %7 = arith.maximumf %5, %6 : vector<8x128xf32>
    %c0_6 = arith.constant 0 : index
    %c0_7 = arith.constant 0 : index
    %8 = vector.load %arg5[%c0_6, %c0_7] : memref<8x128xf32, #tpu.memory_space<vmem>>, vector<8x128xf32>
    tpu.vector_store %arg5[%c0_6, %c0_7], %7 {strides = array<i32>} : memref<8x128xf32, #tpu.memory_space<vmem>>, vector<8x128xf32>,
    return
  }
  func.func @transform_0(%arg0: i32, %arg1: i32) -> (i32, i32) {
    %c0_i32 = arith.constant 0 : i32
    %c0_i32_0 = arith.constant 0 : i32
    return %arg0, %c0_i32 : i32, i32
  }
  func.func @transform_1(%arg0: i32, %arg1: i32) -> (i32, i32) {
    %c0_i32 = arith.constant 0 : i32
    %c0_i32_0 = arith.constant 0 : i32
    return %c0_i32, %arg1 : i32, i32
  }
  func.func @transform_2(%arg0: i32, %arg1: i32) -> (i32, i32) {
    %c0_i32 = arith.constant 0 : i32
    %c0_i32_0 = arith.constant 0 : i32
    return %c0_i32, %arg1 : i32, i32
  }
  func.func @transform_3(%arg0: i32, %arg1: i32) -> (i32, i32) {
    %c0_i32 = arith.constant 0 : i32
    return %arg0, %arg1 : i32, i32
  }
}

</mosaic_0001>

<llo_original>
// kernel: tpu_custom_call.1
$region0: #{tpu_custom_call.1}
  #allocation0 [shape = 'u32[]', space=smem, size = 0x4, offset = 0x4, fixed_abs, tag = 'smem constant byte address 0x4 - core index']
  #allocation1 [shape = 'u32[144,128]{1,0:T(1,128)}', space=vmem, size = 0x12000, scoped, tag = 'internal scratch']
  %s0 = inlined_call_operand.hbm [shape: bf16[8,128], index: 0, kind: input, shape index: {}]
  %s1 = inlined_call_operand.hbm [shape: bf16[128,128], index: 1, kind: input, shape index: {}]
  %s2 = inlined_call_operand.vmem [shape: f32[1,128], index: 2, kind: input, shape index: {}]
  %s3 = inlined_call_operand.hbm [shape: f32[8,128], index: 3, kind: output, shape index: {}]
  %s4 = sld [smem:[#allocation0]]
  $region30: #{tpu_custom_call.1} parent=0
    _
  %s6 = ssub.s32 1, %s4
  %s7 = scalar_select 0, %s6, %s4
  $region1: #{tpu_custom_call.1} parent=0
    #allocation2 [shape = 'u8[2048]{0}', space=vmem, size = 0x800, scoped, tag = 'input window, operand 0, single buffered']
    #allocation3 [shape = 's32[1]{0}', space=sflag, size = 0x4, scoped, tag = 'scoped memory for tpu_custom_call.1']
    #allocation4 [shape = 's32[1]{0}', space=sflag, size = 0x4, scoped, tag = 'scoped memory for tpu_custom_call.1']
    #allocation5 [shape = 'u8[32768]{0}', space=vmem, size = 0x8000, scoped, tag = 'input window, operand 1, single buffered']
    #allocation6 [shape = 's32[1]{0}', space=sflag, size = 0x4, scoped, tag = 'scoped memory for tpu_custom_call.1']
    #allocation7 [shape = 'u8[4096]{0}', space=vmem, size = 0x1000, scoped, tag = 'output window, operand 0, single buffered']
    %8 = vsyncpa [#allocation3], 0
    %9 = vsyncpa [#allocation6], 0
    %10 = vsyncpa [#allocation4], 0
    // Predicated region
    $region2: #{tpu_custom_call.1} parent=1 // pred_check
      _
    $region3: #{tpu_custom_call.1} parent=1 // pred_check_branch
      %12 = sbr.rel (0) target = $region5
    $region4: #{tpu_custom_call.1} parent=1 // pred_region
      %s14 = ssub.s32 64, 64
      %15 = vsyncadd [#allocation3], %s14
      %s17 = sshll.u32 [#allocation2], 4
      %s18 = int_to_ptr.vmem [resolvable:$true] %s17
      %20 = dma.hbm_to_vmem [thread:$0]  %s0, 64, %s18, [#allocation3]
    $region5: #{tpu_custom_call.1} parent=1 // pred_fallthru
      _
    // Predicated region
    $region6: #{tpu_custom_call.1} parent=1 // pred_check
      _
    $region7: #{tpu_custom_call.1} parent=1 // pred_check_branch
      %22 = sbr.rel (0) target = $region9
    $region8: #{tpu_custom_call.1} parent=1 // pred_region
      %s24 = ssub.s32 1024, 1024
      %25 = vsyncadd [#allocation6], %s24
      %s26 = sshll.u32 [#allocation5], 4
      %s27 = int_to_ptr.vmem [resolvable:$true] %s26
      %32 = dma.hbm_to_vmem [thread:$0]  %s1, 1024, %s27, [#allocation6], 64, 64, 4
    $region9: #{tpu_custom_call.1} parent=1 // pred_fallthru
      _
    // Predicated region
    $region10: #{tpu_custom_call.1} parent=1 // pred_check
      _
    $region11: #{tpu_custom_call.1} parent=1 // pred_check_branch
      %34 = sbr.rel (0) target = $region13
    $region12: #{tpu_custom_call.1} parent=1 // pred_region
      _
    $region13: #{tpu_custom_call.1} parent=1 // pred_fallthru
      _
    // Predicated region
    $region14: #{tpu_custom_call.1} parent=1 // pred_check
      _
    $region15: #{tpu_custom_call.1} parent=1 // pred_check_branch
      %36 = sbr.rel (0) target = $region17
    $region16: #{tpu_custom_call.1} parent=1 // pred_region
      %37 = dma.done [#allocation3], 64
    $region17: #{tpu_custom_call.1} parent=1 // pred_fallthru
      _
    // Predicated region
    $region18: #{tpu_custom_call.1} parent=1 // pred_check
      _
    $region19: #{tpu_custom_call.1} parent=1 // pred_check_branch
      %39 = sbr.rel (0) target = $region21
    $region20: #{tpu_custom_call.1} parent=1 // pred_region
      %40 = dma.done [#allocation6], 1024
    $region21: #{tpu_custom_call.1} parent=1 // pred_fallthru
      _
    %v42 = vld [vmem:[#allocation2] sm:$0xf]
    %v43 = vld [vmem:[#allocation5] sm:$0xf]
    %v44 = vld [vmem:[#allocation5 + $0x4] sm:$0xf]
    %v45 = vld [vmem:[#allocation5 + $0x8] sm:$0xf]
    %v46 = vld [vmem:[#allocation5 + $0xc] sm:$0xf]
    %v47 = vld [vmem:[#allocation5 + $0x10] sm:$0xf]
    %v48 = vld [vmem:[#allocation5 + $0x14] sm:$0xf]
    %v49 = vld [vmem:[#allocation5 + $0x18] sm:$0xf]
    %v50 = vld [vmem:[#allocation5 + $0x1c] sm:$0xf]
    %v51 = vld [vmem:[#allocation5 + $0x20] sm:$0xf]
    %v52 = vld [vmem:[#allocation5 + $0x24] sm:$0xf]
    %v53 = vld [vmem:[#allocation5 + $0x28] sm:$0xf]
    %v54 = vld [vmem:[#allocation5 + $0x2c] sm:$0xf]
    %v55 = vld [vmem:[#allocation5 + $0x30] sm:$0xf]
    %v56 = vld [vmem:[#allocation5 + $0x34] sm:$0xf]
    %v57 = vld [vmem:[#allocation5 + $0x38] sm:$0xf]
    %v58 = vld [vmem:[#allocation5 + $0x3c] sm:$0xf]
    %v59 = vld [vmem:[%s2] sm:$0x1]
    %v61 = vlaneseq
    %v62 = vshrl.u32 %v61, 7
    %v63 = vsub.s32 0, %v62
    %v64 = vrot.slane %v59, %v63
    %v82 = vunpack.c.l.b16 %v43
    %v83 = vunpack.c.l.b16 %v44
    %v84 = vunpack.c.l.b16 %v45
    %v85 = vunpack.c.l.b16 %v46
    %v86 = vunpack.c.l.b16 %v47
    %v87 = vunpack.c.l.b16 %v48
    %v88 = vunpack.c.l.b16 %v49
    %v89 = vunpack.c.l.b16 %v50
    %v90 = vunpack.c.l.b16 %v51
    %v91 = vunpack.c.l.b16 %v52
    %v92 = vunpack.c.l.b16 %v53
    %v93 = vunpack.c.l.b16 %v54
    %v94 = vunpack.c.l.b16 %v55
    %v95 = vunpack.c.l.b16 %v56
    %v96 = vunpack.c.l.b16 %v57
    %v97 = vunpack.c.l.b16 %v58
    %v98 = vpack.c.b16 %v83, %v82
    %v99 = vpack.c.b16 %v85, %v84
    %v100 = vpack.c.b16 %v87, %v86
    %v101 = vpack.c.b16 %v89, %v88
    %v102 = vpack.c.b16 %v91, %v90
    %v103 = vpack.c.b16 %v93, %v92
    %v104 = vpack.c.b16 %v95, %v94
    %v105 = vpack.c.b16 %v97, %v96
    %114 = vmatprep.subr.bf16.mxu0 0
    %115 = vmatpush1.bf16.msra.mxu0 %v98
    %116 = vmatprep.subr.bf16.mxu0 0
    %117 = vmatpush1.bf16.msra.mxu0 %v99
    %118 = vmatprep.subr.bf16.mxu0 0
    %119 = vmatpush1.bf16.msra.mxu0 %v100
    %120 = vmatprep.subr.bf16.mxu0 0
    %121 = vmatpush1.bf16.msra.mxu0 %v101
    %122 = vmatprep.subr.bf16.mxu0 0
    %123 = vmatpush1.bf16.msra.mxu0 %v102
    %124 = vmatprep.subr.bf16.mxu0 0
    %125 = vmatpush1.bf16.msra.mxu0 %v103
    %126 = vmatprep.subr.bf16.mxu0 0
    %127 = vmatpush1.bf16.msra.mxu0 %v104
    %128 = vmatprep.subr.bf16.mxu0 0
    %129 = vmatpush1.bf16.msra.mxu0 %v105
    %130 = vmatprep.subr.bf16.mxu0 0
    %131 = vmatpush1.bf16.msra.mxu0 0
    %132 = vmatprep.subr.bf16.mxu0 0
    %133 = vmatpush1.bf16.msra.mxu0 0
    %134 = vmatprep.subr.bf16.mxu0 0
    %135 = vmatpush1.bf16.msra.mxu0 0
    %136 = vmatprep.subr.bf16.mxu0 0
    %137 = vmatpush1.bf16.msra.mxu0 0
    %138 = vmatprep.subr.bf16.mxu0 0
    %139 = vmatpush1.bf16.msra.mxu0 0
    %140 = vmatprep.subr.bf16.mxu0 0
    %141 = vmatpush1.bf16.msra.mxu0 0
    %142 = vmatprep.subr.bf16.mxu0 0
    %143 = vmatpush1.bf16.msra.mxu0 0
    %144 = vmatprep.subr.bf16.mxu0 0
    %145 = vmatpush1.bf16.msra.mxu0 0
    %146 = vmatprep.mubr.bf16.mxu0 0
    %147 = vmatmul.mubr.bf16.gmra.mrb[0].mxu0 %v42
    %v148 = vpop.f32.mrb[0].mxu0
    %v149 = vadd.f32 %v64, %v148
    %v150 = vpop.f32.mrb[0].mxu0
    %v151 = vpop.f32.mrb[0].mxu0
    %v152 = vpop.f32.mrb[0].mxu0
    %153 = vdwg.mxu0
    %v154 = vmax.f32 %v149, 0.0
    %155 = vst [vmem:[#allocation7] sm:$0xff] %v154
    // Predicated region
    $region22: #{tpu_custom_call.1} parent=1 // pred_check
      _
    $region23: #{tpu_custom_call.1} parent=1 // pred_check_branch
      %157 = sbr.rel (0) target = $region25
    $region24: #{tpu_custom_call.1} parent=1 // pred_region
      %s159 = ssub.s32 128, 128
      %160 = vsyncadd [#allocation4], %s159
      %s162 = sshll.u32 [#allocation7], 4
      %s163 = int_to_ptr.vmem [resolvable:$true] %s162
      %165 = dma.vmem_to_hbm [thread:$0]  %s163, 128, %s3, [#allocation4]
    $region25: #{tpu_custom_call.1} parent=1 // pred_fallthru
      _
    // Predicated region
    $region26: #{tpu_custom_call.1} parent=1 // pred_check
      _
    $region27: #{tpu_custom_call.1} parent=1 // pred_check_branch
      %167 = sbr.rel (0) target = $region29
    $region28: #{tpu_custom_call.1} parent=1 // pred_region
      %168 = dma.done [#allocation4], 128
    $region29: #{tpu_custom_call.1} parent=1 // pred_fallthru
      _
    %169 = vsyncpa [#allocation3], 1
    %170 = vsyncpa [#allocation6], 1
    %171 = vsyncpa [#allocation4], 1

</llo_original>
